<compile_context>
chip_gen: v6e
topology: v6e:2x2x1
jax: 0.10.0
libtpu: 0.0.40
codegen_flags: <defaults>
</compile_context>

<pallas_src>
import jax
import jax.numpy as jnp
from jax import lax
from jax.experimental import pallas as pl
from jax.experimental.pallas import tpu as pltpu


# ----------------------------------------------------------------------------
# Pallas kernel: fused active-group + reference forward, batch on lanes.
# ----------------------------------------------------------------------------
def _make_psi_kernel(bf16_tanh: bool):
    def _psi_kernel(x_ref, w1T_ref, b1_ref, whT_ref, bh_ref, out_ref):
        # x_ref  : (TILE_B, N)  basis configurations, native (B, N) HBM layout
        # w1T_ref: (2H, N)      [active group ; reference] layer-1 weights
        # b1_ref : (2H, 1)      stacked layer-1 biases
        # whT_ref: (2, 2H)      fused head: row0 -> dlog_amp, row1 -> dphase
        # bh_ref : (2, 1)       fused head bias (b2_g - b2_ref)
        # out_ref: (2, TILE_B)  row0 = Re(psi), row1 = Im(psi)   (lane-dense)
        x = x_ref[...].astype(jnp.float32)                         # VPU cast (free)

        # NT matmul: contract the feature axis (last dim of BOTH operands) so the
        # result is (2H, TILE_B) with batch on lanes; the operand transpose is
        # handled on-chip (idle MXU/XLU), not as a separate HBM pass.
        pre = lax.dot_general(
            w1T_ref[...], x,
            dimension_numbers=(((1,), (1,)), ((), ())),
            preferred_element_type=jnp.float32,
        ) + b1_ref[...]                                            # (2H, TILE_B)

        if bf16_tanh:
            # v6e/v7x: bf16 EUP tanh (saturating slot) + halved h VMEM traffic.
            h = jnp.tanh(pre.astype(jnp.bfloat16))
            d = lax.dot_general(
                whT_ref[...].astype(jnp.bfloat16), h,
                dimension_numbers=(((1,), (0,)), ((), ())),
                preferred_element_type=jnp.float32,
            ) + bh_ref[...]                                        # (2, TILE_B)
        else:
            h = jnp.tanh(pre)
            d = jnp.dot(whT_ref[...], h,
                        preferred_element_type=jnp.float32) + bh_ref[...]

        dlog = d[0:1, :]                                           # (1, TILE_B)
        dphi = d[1:2, :]                                           # (1, TILE_B)
        amp = jnp.exp(dlog)
        # Single full-block store (no per-row masked stores).
        out_ref[...] = jnp.concatenate(
            [amp * jnp.cos(dphi), amp * jnp.sin(dphi)], axis=0)

    return _psi_kernel


# ----------------------------------------------------------------------------
# Host-side fusion of (active group, reference) parameters.
# ----------------------------------------------------------------------------
def fuse_active_group_params(ens_params, ref_params, active_group):
    """Slice the ensemble to the active group and fuse it with the reference net.

    Returns (w1T, b1c, whT, bhc) for the kernel:
      w1T: (2H, N)  rows [0:H] = group layer-1, rows [H:2H] = reference layer-1
      b1c: (2H, 1)
      whT: (2, 2H)  row0 gives log_amp_g - log_amp_ref, row1 gives dphase
      bhc: (2, 1)
    """
    w1, b1, w2, b2 = ens_params            # (G,N,H), (G,1,H), (G,H,2), (G,1,2)
    w1r, b1r, w2r, b2r = ref_params        # (N,H),   (1,H),   (H,2),   (1,2)
    w1g, b1g = w1[active_group], b1[active_group]
    w2g, b2g = w2[active_group], b2[active_group]

    w1T = jnp.concatenate([w1g.T, w1r.T], axis=0).astype(jnp.float32)      # (2H, N)
    b1c = jnp.concatenate([b1g, b1r], axis=1).T.astype(jnp.float32)        # (2H, 1)
    whT = jnp.concatenate([w2g.T, -w2r.T], axis=1).astype(jnp.float32)     # (2, 2H)
    bhc = (b2g - b2r).T.astype(jnp.float32)                                # (2, 1)
    return w1T, b1c, whT, bhc


# ----------------------------------------------------------------------------
# pallas_call wrapper
# ----------------------------------------------------------------------------
def active_group_psi(basis_input, fused_params, *, tile_b=8192, bf16_tanh=False):
    """Returns (psi_r, psi_i), each of shape (1, batch), float32."""
    w1T, b1c, whT, bhc = fused_params
    if basis_input.dtype == jnp.float64:                 # TPU has no fast f64 path
        basis_input = basis_input.astype(jnp.float32)
    B, N = basis_input.shape
    H2 = w1T.shape[0]

    # --- tile selection ------------------------------------------------------
    # * cap at 8192: the (tile_b, N) x block is lane-padded to 128 lanes in VMEM,
    #   so double-buffered x is 512*tile_b*itemsize bytes -> keep well inside the
    #   32 MiB scoped limit (v7x physical VMEM is only 64 MiB).
    # * for B > 256 guarantee >= 2 grid steps so the "parallel" batch axis can be
    #   sharded over both v7x TensorCores.
    tile_b = max(128, (min(int(tile_b), 8192) // 128) * 128)
    if B <= 256:
        tile_b = min(tile_b, B)                          # tiny batch
    else:
        tile_b = min(tile_b, max(128, ((B // 2) // 128) * 128))
    grid = (pl.cdiv(B, tile_b),)
    # NOTE: a partial last tile is fine — the padded x rows are garbage and may
    # produce inf/NaN through exp/cos/sin, but those output columns are masked
    # on writeback.

    cost = pl.CostEstimate(
        flops=2 * B * (H2 * N + 2 * H2),
        transcendentals=(H2 + 3) * B,                    # 2H tanh + exp + cos + sin
        bytes_accessed=B * (int(basis_input.dtype.itemsize) * N + 8),
    )

    out = pl.pallas_call(
        _make_psi_kernel(bf16_tanh),
        out_shape=jax.ShapeDtypeStruct((2, B), jnp.float32),
        grid=grid,
        in_specs=[
            pl.BlockSpec((tile_b, N), lambda i: (i, 0)),   # x: batch-tiled, no host transpose
            pl.BlockSpec((H2, N), lambda i: (0, 0)),       # fused weights: VMEM-resident
            pl.BlockSpec((H2, 1), lambda i: (0, 0)),
            pl.BlockSpec((2, H2), lambda i: (0, 0)),
            pl.BlockSpec((2, 1), lambda i: (0, 0)),
        ],
        out_specs=pl.BlockSpec((2, tile_b), lambda i: (0, i)),
        compiler_params=pltpu.CompilerParams(
            dimension_semantics=("parallel",),             # shard batch over TCs on v7x
            vmem_limit_bytes=32 * 1024 * 1024,             # safe on v5e/v6e/v7x
        ),
        cost_estimate=cost,
    )(basis_input, w1T, b1c, whT, bhc)

    return out[0:1, :], out[1:2, :]


# ----------------------------------------------------------------------------
# Python-side wrapper mirroring ensemble2ref_wrapper
# ----------------------------------------------------------------------------
class Ensemble2RefWrapper:
    def __init__(self, ens_params, ref_params, expH, stdH, norm, active_group,
                 reference_state=None):
        self.groups = 1
        self.active_group = active_group
        self.reference_state = reference_state
        # stored metadata (unused in forward, same as the PyTorch module)
        self.expH = expH[active_group]
        self.stdH = stdH[active_group]
        self.norm = norm[active_group]
        self.is_wrapped = True
        # Host-side: slice to the active group + fuse with the reference net,
        # so the kernel never evaluates the G-1 unused groups.
        self._fused = fuse_active_group_params(ens_params, ref_params, active_group)

    def forward(self, basis_input, *, tile_b=8192, bf16_tanh=False):
        """Returns wave function psi(basis_input): ((1, batch), (1, batch)).

        bf16_tanh=True computes the layer-1 tanh in bfloat16 (~2x on the
        saturated EUP slot on v6e/v7x; no benefit on v5e).  Default is exact f32.
        """
        return active_group_psi(basis_input, self._fused,
                                tile_b=tile_b, bf16_tanh=bf16_tanh)


# ----------------------------------------------------------------------------
# Pure-JAX reference (for correctness checking only)
# ----------------------------------------------------------------------------
def _reference(basis_input, ens_params, ref_params, active_group):
    w1, b1, w2, b2 = ens_params
    w1r, b1r, w2r, b2r = ref_params
    x = basis_input.astype(jnp.float32)
    hr = jnp.tanh(x @ w1r + b1r)
    out_r = hr @ w2r + b2r
    hg = jnp.tanh(x @ w1[active_group] + b1[active_group])
    out_g = hg @ w2[active_group] + b2[active_group]
    dlog = out_g[:, 0] - out_r[:, 0]
    dphi = out_g[:, 1] - out_r[:, 1]
    amp = jnp.exp(dlog)
    return (amp * jnp.cos(dphi))[None, :], (amp * jnp.sin(dphi))[None, :]


if __name__ == "__main__":
    # Small, forward-consistent shapes.
    B, N, H, G = 256, 16, 32, 2
    B_RAGGED = 200                       # exercises a partial last tile
    active_group = 1

    key = jax.random.PRNGKey(0)
    ks = jax.random.split(key, 12)

    # Deterministic synthetic parameters (no checkpoint loading).
    w1 = 0.2 * jax.random.normal(ks[0], (G, N, H), jnp.float32)
    b1 = 0.1 * jax.random.normal(ks[1], (G, 1, H), jnp.float32)
    w2 = 0.2 * jax.random.normal(ks[2], (G, H, 2), jnp.float32)
    b2 = 0.1 * jax.random.normal(ks[3], (G, 1, 2), jnp.float32)
    w1r = 0.2 * jax.random.normal(ks[4], (N, H), jnp.float32)
    b1r = 0.1 * jax.random.normal(ks[5], (1, H), jnp.float32)
    w2r = 0.2 * jax.random.normal(ks[6], (H, 2), jnp.float32)
    b2r = 0.1 * jax.random.normal(ks[7], (1, 2), jnp.float32)

    expH = jax.random.normal(ks[8], (G,), jnp.float32)
    stdH = jnp.abs(jax.random.normal(ks[9], (G,), jnp.float32))
    norm = jnp.ones((G,), jnp.float32)

    # basis_input: +/-1 spin configurations, float32, native layout (B, N).
    basis_input = jnp.where(
        jax.random.bernoulli(ks[10], 0.5, (B, N)), 1.0, -1.0
    ).astype(jnp.float32)
    basis_ragged = jnp.where(
        jax.random.bernoulli(ks[11], 0.5, (B_RAGGED, N)), 1.0, -1.0
    ).astype(jnp.float32)

    ens_params = (w1, b1, w2, b2)
    ref_params = (w1r, b1r, w2r, b2r)

    wrapper = Ensemble2RefWrapper(ens_params, ref_params, expH, stdH, norm, active_group)

    ref_r, ref_i = _reference(basis_input, ens_params, ref_params, active_group)
    ref_r3, ref_i3 = _reference(basis_ragged, ens_params, ref_params, active_group)

    # 1) Default path (single full-extent block), exact f32.
    psi_r, psi_i = wrapper.forward(basis_input)
    psi_r = jax.block_until_ready(psi_r)
    psi_i = jax.block_until_ready(psi_i)
    assert psi_r.shape == (1, B) and psi_i.shape == (1, B)
    assert jnp.allclose(psi_r, ref_r, rtol=1e-3, atol=1e-3)
    assert jnp.allclose(psi_i, ref_i, rtol=1e-3, atol=1e-3)

    # 2) Multi-step grid path (tile_b=128 -> grid=(2,)) exercising pipelining
    #    and VMEM-resident weights.
    psi_r2, psi_i2 = wrapper.forward(basis_input, tile_b=128)
    assert jnp.allclose(psi_r2, ref_r, rtol=1e-3, atol=1e-3)
    assert jnp.allclose(psi_i2, ref_i, rtol=1e-3, atol=1e-3)

    # 3) Partial last tile (B=200, tile_b=128 -> grid=(2,), last block 72 rows):
    #    padded lanes may blow up through exp() but are masked on writeback.
    psi_r3, psi_i3 = wrapper.forward(basis_ragged, tile_b=128)
    assert psi_r3.shape == (1, B_RAGGED)
    assert bool(jnp.all(jnp.isfinite(psi_r3))) and bool(jnp.all(jnp.isfinite(psi_i3)))
    assert jnp.allclose(psi_r3, ref_r3, rtol=1e-3, atol=1e-3)
    assert jnp.allclose(psi_i3, ref_i3, rtol=1e-3, atol=1e-3)

    # 4) Optional bf16-tanh epilogue (EUP lever on v6e/v7x).  Loose tolerance:
    #    the bf16 tanh error is amplified through exp(); this is a smoke test.
    psi_r4, psi_i4 = wrapper.forward(basis_input, bf16_tanh=True)
    psi_r4 = jax.block_until_ready(psi_r4)
    assert jnp.allclose(psi_r4, ref_r, rtol=1e-1, atol=1e-1)
    assert jnp.allclose(psi_i4, ref_i, rtol=1e-1, atol=1e-1)

    print("KERNEL_OK")
</pallas_src>

<mosaic_0001>
module attributes {stable_mosaic.version = 11 : i64} {
  func.func @_psi_kernel(%arg0: i32, %arg1: memref<256x16xf32, #tpu.memory_space<vmem>>, %arg2: memref<64x16xf32, #tpu.memory_space<vmem>>, %arg3: memref<64x1xf32, #tpu.memory_space<vmem>>, %arg4: memref<2x64xf32, #tpu.memory_space<vmem>>, %arg5: memref<2x1xf32, #tpu.memory_space<vmem>>, %arg6: memref<2x256xf32, #tpu.memory_space<vmem>>) attributes {dimension_semantics = [#tpu.dimension_semantics<parallel>], iteration_bounds = array<i64: 1>, scalar_prefetch = 0 : i64, scratch_operands = 0 : i64, tpu.core_type = #tpu.core_type<tc>, window_params = [{transform_indices = @transform_0, window_bounds = array<i64: 256, 16>}, {pipeline_mode = #tpu.pipeline_mode<synchronous>, transform_indices = @transform_1, window_bounds = array<i64: 64, 16>}, {pipeline_mode = #tpu.pipeline_mode<synchronous>, transform_indices = @transform_2, window_bounds = array<i64: 64, 1>}, {pipeline_mode = #tpu.pipeline_mode<synchronous>, transform_indices = @transform_3, window_bounds = array<i64: 2, 64>}, {pipeline_mode = #tpu.pipeline_mode<synchronous>, transform_indices = @transform_4, window_bounds = array<i64: 2, 1>}, {transform_indices = @transform_5, window_bounds = array<i64: 2, 256>}]} {
    %c0 = arith.constant 0 : index
    %c0_0 = arith.constant 0 : index
    %0 = vector.load %arg1[%c0, %c0_0] : memref<256x16xf32, #tpu.memory_space<vmem>>, vector<256x16xf32>
    %c0_1 = arith.constant 0 : index
    %c0_2 = arith.constant 0 : index
    %1 = vector.load %arg2[%c0_1, %c0_2] : memref<64x16xf32, #tpu.memory_space<vmem>>, vector<64x16xf32>
    %cst = arith.constant dense<0.000000e+00> : vector<64x256xf32>
    %2 = tpu.matmul %1, %0, %cst {dimension_numbers = #tpu.dot_dimension_numbers<[1], [1], [0], [0], [0, 0, 1, 0], [], []>} : vector<64x16xf32>, vector<256x16xf32>, vector<64x256xf32> -> vector<64x256xf32>
    %c0_3 = arith.constant 0 : index
    %c0_4 = arith.constant 0 : index
    %3 = vector.load %arg3[%c0_3, %c0_4] : memref<64x1xf32, #tpu.memory_space<vmem>>, vector<64x1xf32>
    %4 = vector.broadcast %3 : vector<64x1xf32> to vector<64x256xf32>
    %5 = arith.addf %2, %4 : vector<64x256xf32>
    %6 = math.tanh %5 : vector<64x256xf32>
    %c0_5 = arith.constant 0 : index
    %c0_6 = arith.constant 0 : index
    %7 = vector.load %arg4[%c0_5, %c0_6] : memref<2x64xf32, #tpu.memory_space<vmem>>, vector<2x64xf32>
    %cst_7 = arith.constant dense<0.000000e+00> : vector<2x256xf32>
    %8 = tpu.matmul %7, %6, %cst_7 {dimension_numbers = #tpu.dot_dimension_numbers<[1], [0], [0], [1], [0, 0, 1, 1], [], []>} : vector<2x64xf32>, vector<64x256xf32>, vector<2x256xf32> -> vector<2x256xf32>
    %c0_8 = arith.constant 0 : index
    %c0_9 = arith.constant 0 : index
    %9 = vector.load %arg5[%c0_8, %c0_9] : memref<2x1xf32, #tpu.memory_space<vmem>>, vector<2x1xf32>
    %10 = vector.broadcast %9 : vector<2x1xf32> to vector<2x256xf32>
    %11 = arith.addf %8, %10 : vector<2x256xf32>
    %12 = vector.extract_strided_slice %11 {offsets = [0, 0], sizes = [1, 256], strides = [1, 1]} : vector<2x256xf32> to vector<1x256xf32>
    %13 = vector.extract_strided_slice %11 {offsets = [1, 0], sizes = [1, 256], strides = [1, 1]} : vector<2x256xf32> to vector<1x256xf32>
    %14 = math.exp %12 : vector<1x256xf32>
    %15 = math.cos %13 : vector<1x256xf32>
    %16 = arith.mulf %14, %15 : vector<1x256xf32>
    %17 = math.sin %13 : vector<1x256xf32>
    %18 = arith.mulf %14, %17 : vector<1x256xf32>
    %19 = tpu.concatenate %16, %18 in 0 : vector<1x256xf32>, vector<1x256xf32> -> vector<2x256xf32>
    %c0_10 = arith.constant 0 : index
    %c0_11 = arith.constant 0 : index
    %20 = vector.load %arg6[%c0_10, %c0_11] : memref<2x256xf32, #tpu.memory_space<vmem>>, vector<2x256xf32>
    tpu.vector_store %arg6[%c0_10, %c0_11], %19 {strides = array<i32>} : memref<2x256xf32, #tpu.memory_space<vmem>>, vector<2x256xf32>,
    return
  }
  func.func @transform_0(%arg0: i32) -> (i32, i32) {
    %c0_i32 = arith.constant 0 : i32
    %c0_i32_0 = arith.constant 0 : i32
    return %arg0, %c0_i32 : i32, i32
  }
  func.func @transform_1(%arg0: i32) -> (i32, i32) {
    %c0_i32 = arith.constant 0 : i32
    %c0_i32_0 = arith.constant 0 : i32
    %c0_i32_1 = arith.constant 0 : i32
    return %c0_i32, %c0_i32_0 : i32, i32
  }
  func.func @transform_2(%arg0: i32) -> (i32, i32) {
    %c0_i32 = arith.constant 0 : i32
    %c0_i32_0 = arith.constant 0 : i32
    %c0_i32_1 = arith.constant 0 : i32
    return %c0_i32, %c0_i32_0 : i32, i32
  }
  func.func @transform_3(%arg0: i32) -> (i32, i32) {
    %c0_i32 = arith.constant 0 : i32
    %c0_i32_0 = arith.constant 0 : i32
    %c0_i32_1 = arith.constant 0 : i32
    return %c0_i32, %c0_i32_0 : i32, i32
  }
  func.func @transform_4(%arg0: i32) -> (i32, i32) {
    %c0_i32 = arith.constant 0 : i32
    %c0_i32_0 = arith.constant 0 : i32
    %c0_i32_1 = arith.constant 0 : i32
    return %c0_i32, %c0_i32_0 : i32, i32
  }
  func.func @transform_5(%arg0: i32) -> (i32, i32) {
    %c0_i32 = arith.constant 0 : i32
    %c0_i32_0 = arith.constant 0 : i32
    return %c0_i32, %arg0 : i32, i32
  }
}

</mosaic_0001>

<llo_original>
// kernel: tpu_custom_call.1
$region0: #{tpu_custom_call.1}
  #allocation0 [shape = 'u32[]', space=smem, size = 0x4, offset = 0x4, fixed_abs, tag = 'smem constant byte address 0x4 - core index']
  #allocation1 [shape = 'u32[144,128]{1,0:T(1,128)}', space=vmem, size = 0x12000, scoped, tag = 'internal scratch']
  %s0 = inlined_call_operand.vmem [shape: f32[256,16], index: 0, kind: input, shape index: {}]
  %s1 = inlined_call_operand.vmem [shape: f32[64,16], index: 1, kind: input, shape index: {}]
  %s2 = inlined_call_operand.vmem [shape: f32[64,1], index: 2, kind: input, shape index: {}]
  %s3 = inlined_call_operand.vmem [shape: f32[2,64], index: 3, kind: input, shape index: {}]
  %s4 = inlined_call_operand.vmem [shape: f32[2,1], index: 4, kind: input, shape index: {}]
  %s5 = inlined_call_operand.hbm [shape: f32[2,256], index: 5, kind: output, shape index: {}]
  %s6 = sld [smem:[#allocation0]]
  $region30: #{tpu_custom_call.1} parent=0
    _
  %s8 = ssub.s32 1, %s6
  %s9 = scalar_select 0, %s8, %s6
  $region1: #{tpu_custom_call.1} parent=0
    #allocation2 [shape = 'u8[2048]{0}', space=vmem, size = 0x800, scoped, tag = 'output window, operand 0, single buffered']
    #allocation3 [shape = 's32[1]{0}', space=sflag, size = 0x4, scoped, tag = 'scoped memory for tpu_custom_call.1']
    %10 = vsyncpa [#allocation3], 0
    // Predicated region
    $region2: #{tpu_custom_call.1} parent=1 // pred_check
      _
    $region3: #{tpu_custom_call.1} parent=1 // pred_check_branch
      %12 = sbr.rel (0) target = $region5
    $region4: #{tpu_custom_call.1} parent=1 // pred_region
      _
    $region5: #{tpu_custom_call.1} parent=1 // pred_fallthru
      _
    // Predicated region
    $region6: #{tpu_custom_call.1} parent=1 // pred_check
      _
    $region7: #{tpu_custom_call.1} parent=1 // pred_check_branch
      %14 = sbr.rel (0) target = $region9
    $region8: #{tpu_custom_call.1} parent=1 // pred_region
      _
    $region9: #{tpu_custom_call.1} parent=1 // pred_fallthru
      _
    // Predicated region
    $region10: #{tpu_custom_call.1} parent=1 // pred_check
      _
    $region11: #{tpu_custom_call.1} parent=1 // pred_check_branch
      %16 = sbr.rel (0) target = $region13
    $region12: #{tpu_custom_call.1} parent=1 // pred_region
      _
    $region13: #{tpu_custom_call.1} parent=1 // pred_fallthru
      _
    // Predicated region
    $region14: #{tpu_custom_call.1} parent=1 // pred_check
      _
    $region15: #{tpu_custom_call.1} parent=1 // pred_check_branch
      %18 = sbr.rel (0) target = $region17
    $region16: #{tpu_custom_call.1} parent=1 // pred_region
      _
    $region17: #{tpu_custom_call.1} parent=1 // pred_fallthru
      _
    // Predicated region
    $region18: #{tpu_custom_call.1} parent=1 // pred_check
      _
    $region19: #{tpu_custom_call.1} parent=1 // pred_check_branch
      %20 = sbr.rel (0) target = $region21
    $region20: #{tpu_custom_call.1} parent=1 // pred_region
      _
    $region21: #{tpu_custom_call.1} parent=1 // pred_fallthru
      _
    %v21 = vld [vmem:[%s0] sm:$0xff]
    %v22 = vld [vmem:[%s0 + $0x8] sm:$0xff]
    %v23 = vld [vmem:[%s0 + $0x10] sm:$0xff]
    %v24 = vld [vmem:[%s0 + $0x18] sm:$0xff]
    %v25 = vld [vmem:[%s0 + $0x20] sm:$0xff]
    %v26 = vld [vmem:[%s0 + $0x28] sm:$0xff]
    %v27 = vld [vmem:[%s0 + $0x30] sm:$0xff]
    %v28 = vld [vmem:[%s0 + $0x38] sm:$0xff]
    %v29 = vld [vmem:[%s0 + $0x40] sm:$0xff]
    %v30 = vld [vmem:[%s0 + $0x48] sm:$0xff]
    %v31 = vld [vmem:[%s0 + $0x50] sm:$0xff]
    %v32 = vld [vmem:[%s0 + $0x58] sm:$0xff]
    %v33 = vld [vmem:[%s0 + $0x60] sm:$0xff]
    %v34 = vld [vmem:[%s0 + $0x68] sm:$0xff]
    %v35 = vld [vmem:[%s0 + $0x70] sm:$0xff]
    %v36 = vld [vmem:[%s0 + $0x78] sm:$0xff]
    %v37 = vld [vmem:[%s0 + $0x80] sm:$0xff]
    %v38 = vld [vmem:[%s0 + $0x88] sm:$0xff]
    %v39 = vld [vmem:[%s0 + $0x90] sm:$0xff]
    %v40 = vld [vmem:[%s0 + $0x98] sm:$0xff]
    %v41 = vld [vmem:[%s0 + $0xa0] sm:$0xff]
    %v42 = vld [vmem:[%s0 + $0xa8] sm:$0xff]
    %v43 = vld [vmem:[%s0 + $0xb0] sm:$0xff]
    %v44 = vld [vmem:[%s0 + $0xb8] sm:$0xff]
    %v45 = vld [vmem:[%s0 + $0xc0] sm:$0xff]
    %v46 = vld [vmem:[%s0 + $0xc8] sm:$0xff]
    %v47 = vld [vmem:[%s0 + $0xd0] sm:$0xff]
    %v48 = vld [vmem:[%s0 + $0xd8] sm:$0xff]
    %v49 = vld [vmem:[%s0 + $0xe0] sm:$0xff]
    %v50 = vld [vmem:[%s0 + $0xe8] sm:$0xff]
    %v51 = vld [vmem:[%s0 + $0xf0] sm:$0xff]
    %v52 = vld [vmem:[%s0 + $0xf8] sm:$0xff]
    %v53 = vld [vmem:[%s1] sm:$0xff]
    %v54 = vld [vmem:[%s1 + $0x8] sm:$0xff]
    %v55 = vld [vmem:[%s1 + $0x10] sm:$0xff]
    %v56 = vld [vmem:[%s1 + $0x18] sm:$0xff]
    %v57 = vld [vmem:[%s1 + $0x20] sm:$0xff]
    %v58 = vld [vmem:[%s1 + $0x28] sm:$0xff]
    %v59 = vld [vmem:[%s1 + $0x30] sm:$0xff]
    %v60 = vld [vmem:[%s1 + $0x38] sm:$0xff]
    %v61 = vld [vmem:[%s2] sm:$0xff]
    %v62 = vld [vmem:[%s2 + $0x8] sm:$0xff]
    %v63 = vld [vmem:[%s2 + $0x10] sm:$0xff]
    %v64 = vld [vmem:[%s2 + $0x18] sm:$0xff]
    %v65 = vld [vmem:[%s2 + $0x20] sm:$0xff]
    %v66 = vld [vmem:[%s2 + $0x28] sm:$0xff]
    %v67 = vld [vmem:[%s2 + $0x30] sm:$0xff]
    %v68 = vld [vmem:[%s2 + $0x38] sm:$0xff]
    %70 = vset.pattern.permute.xlu0 0
    %71 = vperm.xlu0 %70, %v61
    %v72 = vpop.permute.xlu0 %71
    %75 = vset.pattern.permute.xlu0 0
    %76 = vperm.xlu0 %75, %v62
    %v77 = vpop.permute.xlu0 %76
    %80 = vset.pattern.permute.xlu0 0
    %81 = vperm.xlu0 %80, %v63
    %v82 = vpop.permute.xlu0 %81
    %85 = vset.pattern.permute.xlu0 0
    %86 = vperm.xlu0 %85, %v64
    %v87 = vpop.permute.xlu0 %86
    %90 = vset.pattern.permute.xlu0 0
    %91 = vperm.xlu0 %90, %v65
    %v92 = vpop.permute.xlu0 %91
    %95 = vset.pattern.permute.xlu0 0
    %96 = vperm.xlu0 %95, %v66
    %v97 = vpop.permute.xlu0 %96
    %100 = vset.pattern.permute.xlu0 0
    %101 = vperm.xlu0 %100, %v67
    %v102 = vpop.permute.xlu0 %101
    %105 = vset.pattern.permute.xlu0 0
    %106 = vperm.xlu0 %105, %v68
    %v107 = vpop.permute.xlu0 %106
    %vm109 = vcmask 130048
    %v111 = vsel %vm109, %v53, 0
    %v114 = vsel %vm109, %v54, 0
    %v117 = vsel %vm109, %v55, 0
    %v120 = vsel %vm109, %v56, 0
    %v123 = vsel %vm109, %v57, 0
    %v126 = vsel %vm109, %v58, 0
    %v129 = vsel %vm109, %v59, 0
    %v132 = vsel %vm109, %v60, 0
    %v135 = vsel %vm109, %v21, 0
    %v138 = vsel %vm109, %v22, 0
    %v141 = vsel %vm109, %v23, 0
    %v144 = vsel %vm109, %v24, 0
    %v147 = vsel %vm109, %v25, 0
    %v150 = vsel %vm109, %v26, 0
    %v153 = vsel %vm109, %v27, 0
    %v156 = vsel %vm109, %v28, 0
    %v159 = vsel %vm109, %v29, 0
    %v162 = vsel %vm109, %v30, 0
    %v165 = vsel %vm109, %v31, 0
    %v168 = vsel %vm109, %v32, 0
    %v171 = vsel %vm109, %v33, 0
    %v174 = vsel %vm109, %v34, 0
    %v177 = vsel %vm109, %v35, 0
    %v180 = vsel %vm109, %v36, 0
    %v183 = vsel %vm109, %v37, 0
    %v186 = vsel %vm109, %v38, 0
    %v189 = vsel %vm109, %v39, 0
    %v192 = vsel %vm109, %v40, 0
    %v195 = vsel %vm109, %v41, 0
    %v198 = vsel %vm109, %v42, 0
    %v201 = vsel %vm109, %v43, 0
    %v204 = vsel %vm109, %v44, 0
    %v207 = vsel %vm109, %v45, 0
    %v210 = vsel %vm109, %v46, 0
    %v213 = vsel %vm109, %v47, 0
    %v216 = vsel %vm109, %v48, 0
    %v219 = vsel %vm109, %v49, 0
    %v222 = vsel %vm109, %v50, 0
    %v225 = vsel %vm109, %v51, 0
    %v228 = vsel %vm109, %v52, 0
    %230 = vmatprep.subr.mxu0 0.0
    %231 = vmatpush1.xpose.msra.mxu0 %v180
    %232 = vmatprep.subr.mxu0 0.0
    %233 = vmatpush1.xpose.msra.mxu0 %v177
    %234 = vmatprep.subr.mxu0 0.0
    %235 = vmatpush1.xpose.msra.mxu0 %v174
    %236 = vmatprep.subr.mxu0 0.0
    %237 = vmatpush1.xpose.msra.mxu0 %v171
    %238 = vmatprep.subr.mxu0 0.0
    %239 = vmatpush1.xpose.msra.mxu0 %v168
    %240 = vmatprep.subr.mxu0 0.0
    %241 = vmatpush1.xpose.msra.mxu0 %v165
    %242 = vmatprep.subr.mxu0 0.0
    %243 = vmatpush1.xpose.msra.mxu0 %v162
    %244 = vmatprep.subr.mxu0 0.0
    %245 = vmatpush1.xpose.msra.mxu0 %v159
    %246 = vmatprep.subr.mxu0 0.0
    %247 = vmatpush1.xpose.msra.mxu0 %v156
    %248 = vmatprep.subr.mxu0 0.0
    %249 = vmatpush1.xpose.msra.mxu0 %v153
    %250 = vmatprep.subr.mxu0 0.0
    %251 = vmatpush1.xpose.msra.mxu0 %v150
    %252 = vmatprep.subr.mxu0 0.0
    %253 = vmatpush1.xpose.msra.mxu0 %v147
    %254 = vmatprep.subr.mxu0 0.0
    %255 = vmatpush1.xpose.msra.mxu0 %v144
    %256 = vmatprep.subr.mxu0 0.0
    %257 = vmatpush1.xpose.msra.mxu0 %v141
    %258 = vmatprep.subr.mxu0 0.0
    %259 = vmatpush1.xpose.msra.mxu0 %v138
    %260 = vmatprep.subr.mxu0 0.0
    %261 = vmatpush1.xpose.msra.mxu0 %v135
    %262 = vmatprep.subr.mxu0 0.0
    %263 = vmatpush2.xpose.msra.mxu0 %v228
    %264 = vmatprep.subr.mxu0 0.0
    %265 = vmatpush2.xpose.msra.mxu0 %v225
    %266 = vmatprep.subr.mxu0 0.0
    %267 = vmatpush2.xpose.msra.mxu0 %v222
    %268 = vmatprep.subr.mxu0 0.0
    %269 = vmatpush2.xpose.msra.mxu0 %v219
    %270 = vmatprep.subr.mxu0 0.0
    %271 = vmatpush2.xpose.msra.mxu0 %v216
    %272 = vmatprep.subr.mxu0 0.0
    %273 = vmatpush2.xpose.msra.mxu0 %v213
    %274 = vmatprep.subr.mxu0 0.0
    %275 = vmatpush2.xpose.msra.mxu0 %v210
    %276 = vmatprep.subr.mxu0 0.0
    %277 = vmatpush2.xpose.msra.mxu0 %v207
    %278 = vmatprep.subr.mxu0 0.0
    %279 = vmatpush2.xpose.msra.mxu0 %v204
    %280 = vmatprep.subr.mxu0 0.0
    %281 = vmatpush2.xpose.msra.mxu0 %v201
    %282 = vmatprep.subr.mxu0 0.0
    %283 = vmatpush2.xpose.msra.mxu0 %v198
    %284 = vmatprep.subr.mxu0 0.0
    %285 = vmatpush2.xpose.msra.mxu0 %v195
    %286 = vmatprep.subr.mxu0 0.0
    %287 = vmatpush2.xpose.msra.mxu0 %v192
    %288 = vmatprep.subr.mxu0 0.0
    %289 = vmatpush2.xpose.msra.mxu0 %v189
    %290 = vmatprep.subr.mxu0 0.0
    %291 = vmatpush2.xpose.msra.mxu0 %v186
    %292 = vmatprep.subr.mxu0 0.0
    %293 = vmatpush2.xpose.msra.mxu0 %v183
    %294 = vmatprep.mubr.f32.mxu0 0.0
    %295 = vmatmul.mubr.f32.gmra.mxu0 %v111
    %v296 = vpop.f32.mrf.mxu0
    %v297 = vadd.f32 %v72, %v296
    %v298 = vpop.f32.mrf.mxu0
    %v299 = vadd.f32 %v72, %v298
    %300 = vmatprep.mubr.f32.mxu0 0.0
    %301 = vmatmul.mubr.f32.gmra.mxu0 %v114
    %v302 = vpop.f32.mrf.mxu0
    %v303 = vadd.f32 %v77, %v302
    %v304 = vpop.f32.mrf.mxu0
    %v305 = vadd.f32 %v77, %v304
    %306 = vmatprep.mubr.f32.mxu0 0.0
    %307 = vmatmul.mubr.f32.gmra.mxu0 %v117
    %v308 = vpop.f32.mrf.mxu0
    %v309 = vadd.f32 %v82, %v308
    %v310 = vpop.f32.mrf.mxu0
    %v311 = vadd.f32 %v82, %v310
    %312 = vmatprep.mubr.f32.mxu0 0.0
    %313 = vmatmul.mubr.f32.gmra.mxu0 %v120
    %v314 = vpop.f32.mrf.mxu0
    %v315 = vadd.f32 %v87, %v314
    %v316 = vpop.f32.mrf.mxu0
    %v317 = vadd.f32 %v87, %v316
    %318 = vmatprep.mubr.f32.mxu0 0.0
    %319 = vmatmul.mubr.f32.gmra.mxu0 %v123
    %v320 = vpop.f32.mrf.mxu0
    %v321 = vadd.f32 %v92, %v320
    %v322 = vpop.f32.mrf.mxu0
    %v323 = vadd.f32 %v92, %v322
    %324 = vmatprep.mubr.f32.mxu0 0.0
    %325 = vmatmul.mubr.f32.gmra.mxu0 %v126
    %v326 = vpop.f32.mrf.mxu0
    %v327 = vadd.f32 %v97, %v326
    %v328 = vpop.f32.mrf.mxu0
    %v329 = vadd.f32 %v97, %v328
    %330 = vmatprep.mubr.f32.mxu0 0.0
    %331 = vmatmul.mubr.f32.gmra.mxu0 %v129
    %v332 = vpop.f32.mrf.mxu0
    %v333 = vadd.f32 %v102, %v332
    %v334 = vpop.f32.mrf.mxu0
    %v335 = vadd.f32 %v102, %v334
    %336 = vmatprep.mubr.f32.mxu0 0.0
    %337 = vmatmul.mubr.f32.gmra.mxu0 %v132
    %v338 = vpop.f32.mrf.mxu0
    %v339 = vadd.f32 %v107, %v338
    %v340 = vpop.f32.mrf.mxu0
    %v341 = vadd.f32 %v107, %v340
    %342 = vdwg.mxu0
    %v343 = vtanh.pop %v297
    %v344 = vtanh.pop %v299
    %v345 = vtanh.pop %v303
    %v346 = vtanh.pop %v305
    %v347 = vtanh.pop %v309
    %v348 = vtanh.pop %v311
    %v349 = vtanh.pop %v315
    %v350 = vtanh.pop %v317
    %v351 = vtanh.pop %v321
    %v352 = vtanh.pop %v323
    %v353 = vtanh.pop %v327
    %v354 = vtanh.pop %v329
    %v355 = vtanh.pop %v333
    %v356 = vtanh.pop %v335
    %v357 = vtanh.pop %v339
    %v358 = vtanh.pop %v341
    %v359 = vld [vmem:[%s3] sm:$0x3]
    %v360 = vld [vmem:[%s4] sm:$0x3]
    %362 = vset.pattern.permute.xlu0 0
    %363 = vperm.xlu0 %362, %v360
    %v364 = vpop.permute.xlu0 %363
    %vm366 = vcmask 523264
    %v368 = vsel %vm366, %v359, 0
    %370 = vmatprep.subr.mxu0 0.0
    %371 = vmatpush1.msra.mxu0 0.0
    %372 = vmatprep.subr.mxu0 0.0
    %373 = vmatpush1.msra.mxu0 0.0
    %374 = vmatprep.subr.mxu0 0.0
    %375 = vmatpush1.msra.mxu0 0.0
    %376 = vmatprep.subr.mxu0 0.0
    %377 = vmatpush1.msra.mxu0 0.0
    %378 = vmatprep.subr.mxu0 0.0
    %379 = vmatpush1.msra.mxu0 0.0
    %380 = vmatprep.subr.mxu0 0.0
    %381 = vmatpush1.msra.mxu0 0.0
    %382 = vmatprep.subr.mxu0 0.0
    %383 = vmatpush1.msra.mxu0 0.0
    %384 = vmatprep.subr.mxu0 0.0
    %385 = vmatpush1.msra.mxu0 0.0
    %386 = vmatprep.subr.mxu0 %v358
    %387 = vmatpush1.msra.mxu0 %v357
    %388 = vmatprep.subr.mxu0 %v356
    %389 = vmatpush1.msra.mxu0 %v355
    %390 = vmatprep.subr.mxu0 %v354
    %391 = vmatpush1.msra.mxu0 %v353
    %392 = vmatprep.subr.mxu0 %v352
    %393 = vmatpush1.msra.mxu0 %v351
    %394 = vmatprep.subr.mxu0 %v350
    %395 = vmatpush1.msra.mxu0 %v349
    %396 = vmatprep.subr.mxu0 %v348
    %397 = vmatpush1.msra.mxu0 %v347
    %398 = vmatprep.subr.mxu0 %v346
    %399 = vmatpush1.msra.mxu0 %v345
    %400 = vmatprep.subr.mxu0 %v344
    %401 = vmatpush1.msra.mxu0 %v343
    %402 = vmatprep.subr.mxu0 0.0
    %403 = vmatpush2.msra.mxu0 0.0
    %404 = vmatprep.subr.mxu0 0.0
    %405 = vmatpush2.msra.mxu0 0.0
    %406 = vmatprep.subr.mxu0 0.0
    %407 = vmatpush2.msra.mxu0 0.0
    %408 = vmatprep.subr.mxu0 0.0
    %409 = vmatpush2.msra.mxu0 0.0
    %410 = vmatprep.subr.mxu0 0.0
    %411 = vmatpush2.msra.mxu0 0.0
    %412 = vmatprep.subr.mxu0 0.0
    %413 = vmatpush2.msra.mxu0 0.0
    %414 = vmatprep.subr.mxu0 0.0
    %415 = vmatpush2.msra.mxu0 0.0
    %416 = vmatprep.subr.mxu0 0.0
    %417 = vmatpush2.msra.mxu0 0.0
    %418 = vmatprep.subr.mxu0 0.0
    %419 = vmatpush2.msra.mxu0 0.0
    %420 = vmatprep.subr.mxu0 0.0
    %421 = vmatpush2.msra.mxu0 0.0
    %422 = vmatprep.subr.mxu0 0.0
    %423 = vmatpush2.msra.mxu0 0.0
    %424 = vmatprep.subr.mxu0 0.0
    %425 = vmatpush2.msra.mxu0 0.0
    %426 = vmatprep.subr.mxu0 0.0
    %427 = vmatpush2.msra.mxu0 0.0
    %428 = vmatprep.subr.mxu0 0.0
    %429 = vmatpush2.msra.mxu0 0.0
    %430 = vmatprep.subr.mxu0 0.0
    %431 = vmatpush2.msra.mxu0 0.0
    %432 = vmatprep.subr.mxu0 0.0
    %433 = vmatpush2.msra.mxu0 0.0
    %434 = vmatprep.mubr.f32.mxu0 0.0
    %435 = vmatmul.mubr.f32.gmra.mxu0 %v368
    %v436 = vpop.f32.mrf.mxu0
    %v437 = vadd.f32 %v364, %v436
    %v438 = vpop.f32.mrf.mxu0
    %v439 = vadd.f32 %v364, %v438
    %440 = vdwg.mxu0
    %v441 = vmul.f32 %v437, 1.442695
    %v442 = vpow.pop %v441
    %v443 = vmul.f32 %v439, 1.442695
    %v444 = vpow.pop %v443
    %v445 = vand.u32 2147483647, %v437
    %vm446 = vcmp.le.f32.partialorder %v445, 0.7853982
    %vm447 = vcmp.lt.s32.totalorder %v437, 0
    %v448 = vand.u32 %v437, 2139095040
    %v449 = vshrl.u32 %v448, 23
    %v450 = vsub.s32 %v449, 127
    %v451 = vand.u32 2147483647, %v437
    %v452 = vand.u32 %v451, 8388607
    %v453 = vor.u32 %v452, 8388608
    %v454 = vsub.s32 0, %v453
    %v455 = vadd.s32 %v450, 1
    %vm456 = vcmp.gt.s32.totalorder %v455, 0
    %v457 = vsel %vm456, %v455, 0
    %v458 = vshrl.u32 %v457, 5
    %v459 = vand.u32 %v457, 31
    %v460 = vsub.s32 32, %v459
    %v461 = vshrl.u32 683565275, %v460
    %v462 = vshll.u32 683565275, %v459
    %v463 = vshrl.u32 2475754826, %v460
    %v464 = vor.u32 %v462, %v463
    %v465 = vshll.u32 2475754826, %v459
    %v466 = vshrl.u32 2131351028, %v460
    %v467 = vor.u32 %v465, %v466
    %v468 = vshll.u32 2131351028, %v459
    %v469 = vshrl.u32 2102212464, %v460
    %v470 = vor.u32 %v468, %v469
    %v471 = vshll.u32 2102212464, %v459
    %v472 = vshrl.u32 920167782, %v460
    %v473 = vor.u32 %v471, %v472
    %v474 = vshll.u32 920167782, %v459
    %v475 = vshrl.u32 1326507024, %v460
    %v476 = vor.u32 %v474, %v475
    %vm477 = vcmp.lt.s32.totalorder %v458, 1
    %vm478 = vcmp.lt.s32.totalorder %v458, 2
    %vm479 = vcmp.lt.s32.totalorder %v458, 3
    %vm480 = vcmp.lt.s32.totalorder %v458, 4
    %v481 = vsel %vm477, %v461, %v464
    %v482 = vsel %vm480, %v470, 2102212464
    %v483 = vsel %vm479, %v467, %v482
    %v484 = vsel %vm478, %v481, %v483
    %v485 = vsel %vm477, %v464, %v467
    %v486 = vsel %vm480, %v473, 920167782
    %v487 = vsel %vm479, %v470, %v486
    %v488 = vsel %vm478, %v485, %v487
    %v489 = vsel %vm477, %v467, %v470
    %v490 = vsel %vm480, %v476, 1326507024
    %v491 = vsel %vm479, %v473, %v490
    %v492 = vsel %vm478, %v489, %v491
    %v493 = vshll.u32 %v453, 8
    %v494 = vmul.u32.u64.compose %v493, %v492
    %v495 = vextract.low.u32 %v494
    %v496 = vextract.high.u32 %v494
    %v497 = vmul.u32.u64.compose %v493, %v488
    %v498 = vextract.low.u32 %v497
    %v499 = vextract.high.u32 %v497
    %v500 = vmul.u32 %v493, %v484
    %v501 = vadd.s32 %v496, %v498
    %vm502 = vc.u32 %v496, %v498
    %v503 = vadd.s32 %v499, 1
    %v504 = vsel %vm502, %v503, %v499
    %v505 = vadd.s32 %v500, %v504
    %v506 = vadd.s32 %v505, 536870912
    %v507 = vshrl.u32 %v506, 30
    %v508 = vshll.u32 %v507, 30
    %v509 = vsub.s32 %v505, %v508
    %vm510 = vcmp.lt.s32.totalorder %v509, 0
    %v511 = vsub.s32 0, %v509
    %v512 = vsel %vm510, %v511, %v509
    %v513 = vclz %v512
    %v514 = vsub.s32 %v513, 2
    %vm515 = vcmp.gt.s32.totalorder 0, %v514
    %v516 = vsel %vm515, 0, %v514
    %v517 = vsub.s32 32, %v516
    %v518 = vshll.u32 %v509, %v516
    %v519 = vshrl.u32 %v501, %v517
    %v520 = vor.u32 %v518, %v519
    %v521 = vsub.s32 4294967266, %v516
    %v522 = vadd.s32 %v521, 127
    %v523 = vshll.u32 %v522, 23
    %v524 = vor.u32 4788187, %v523
    %v525 = vand.u32 2147483647, %v524
    %v527 = vcvt.s32.f32 %v520
    %v528 = vmul.f32 %v527, %v525
    %v529 = vxor.u32 %v528, 2147483648
    %v530 = vsel %vm447, %v529, %v528
    %v531 = vsub.s32 4, %v507
    %v532 = vsel %vm447, %v531, %v507
    %v533 = vsel %vm446, %v437, %v530
    %v534 = vsel %vm446, 0, %v532
    %v535 = vcosq.f32.pop %v533
    %v536 = vsinq.f32.pop %v533
    %vm537 = vweird.f32 %v437
    %v538 = vand.u32 %v534, 3
    %vm539 = vcmp.lt.s32.totalorder %v538, 2
    %vm540 = vcmp.eq.s32.totalorder %v538, 0
    %v541 = vxor.u32 %v536, 2147483648
    %v542 = vsel %vm540, %v535, %v541
    %vm543 = vcmp.eq.s32.totalorder %v538, 2
    %v544 = vxor.u32 %v535, 2147483648
    %v545 = vsel %vm543, %v544, %v536
    %v546 = vsel %vm539, %v542, %v545
    %v547 = vsel %vm537, nan, %v546
    %v548 = vand.u32 2147483647, %v439
    %vm549 = vcmp.le.f32.partialorder %v548, 0.7853982
    %vm550 = vcmp.lt.s32.totalorder %v439, 0
    %v551 = vand.u32 %v439, 2139095040
    %v552 = vshrl.u32 %v551, 23
    %v553 = vsub.s32 %v552, 127
    %v554 = vand.u32 2147483647, %v439
    %v555 = vand.u32 %v554, 8388607
    %v556 = vor.u32 %v555, 8388608
    %v557 = vsub.s32 0, %v556
    %v558 = vadd.s32 %v553, 1
    %vm559 = vcmp.gt.s32.totalorder %v558, 0
    %v560 = vsel %vm559, %v558, 0
    %v561 = vshrl.u32 %v560, 5
    %v562 = vand.u32 %v560, 31
    %v563 = vsub.s32 32, %v562
    %v564 = vshrl.u32 683565275, %v563
    %v565 = vshll.u32 683565275, %v562
    %v566 = vshrl.u32 2475754826, %v563
    %v567 = vor.u32 %v565, %v566
    %v568 = vshll.u32 2475754826, %v562
    %v569 = vshrl.u32 2131351028, %v563
    %v570 = vor.u32 %v568, %v569
    %v571 = vshll.u32 2131351028, %v562
    %v572 = vshrl.u32 2102212464, %v563
    %v573 = vor.u32 %v571, %v572
    %v574 = vshll.u32 2102212464, %v562
    %v575 = vshrl.u32 920167782, %v563
    %v576 = vor.u32 %v574, %v575
    %v577 = vshll.u32 920167782, %v562
    %v578 = vshrl.u32 1326507024, %v563
    %v579 = vor.u32 %v577, %v578
    %vm580 = vcmp.lt.s32.totalorder %v561, 1
    %vm581 = vcmp.lt.s32.totalorder %v561, 2
    %vm582 = vcmp.lt.s32.totalorder %v561, 3
    %vm583 = vcmp.lt.s32.totalorder %v561, 4
    %v584 = vsel %vm580, %v564, %v567
    %v585 = vsel %vm583, %v573, 2102212464
    %v586 = vsel %vm582, %v570, %v585
    %v587 = vsel %vm581, %v584, %v586
    %v588 = vsel %vm580, %v567, %v570
    %v589 = vsel %vm583, %v576, 920167782
    %v590 = vsel %vm582, %v573, %v589
    %v591 = vsel %vm581, %v588, %v590
    %v592 = vsel %vm580, %v570, %v573
    %v593 = vsel %vm583, %v579, 1326507024
    %v594 = vsel %vm582, %v576, %v593
    %v595 = vsel %vm581, %v592, %v594
    %v596 = vshll.u32 %v556, 8
    %v597 = vmul.u32.u64.compose %v596, %v595
    %v598 = vextract.low.u32 %v597
    %v599 = vextract.high.u32 %v597
    %v600 = vmul.u32.u64.compose %v596, %v591
    %v601 = vextract.low.u32 %v600
    %v602 = vextract.high.u32 %v600
    %v603 = vmul.u32 %v596, %v587
    %v604 = vadd.s32 %v599, %v601
    %vm605 = vc.u32 %v599, %v601
    %v606 = vadd.s32 %v602, 1
    %v607 = vsel %vm605, %v606, %v602
    %v608 = vadd.s32 %v603, %v607
    %v609 = vadd.s32 %v608, 536870912
    %v610 = vshrl.u32 %v609, 30
    %v611 = vshll.u32 %v610, 30
    %v612 = vsub.s32 %v608, %v611
    %vm613 = vcmp.lt.s32.totalorder %v612, 0
    %v614 = vsub.s32 0, %v612
    %v615 = vsel %vm613, %v614, %v612
    %v616 = vclz %v615
    %v617 = vsub.s32 %v616, 2
    %vm618 = vcmp.gt.s32.totalorder 0, %v617
    %v619 = vsel %vm618, 0, %v617
    %v620 = vsub.s32 32, %v619
    %v621 = vshll.u32 %v612, %v619
    %v622 = vshrl.u32 %v604, %v620
    %v623 = vor.u32 %v621, %v622
    %v624 = vsub.s32 4294967266, %v619
    %v625 = vadd.s32 %v624, 127
    %v626 = vshll.u32 %v625, 23
    %v627 = vor.u32 4788187, %v626
    %v628 = vand.u32 2147483647, %v627
    %v630 = vcvt.s32.f32 %v623
    %v631 = vmul.f32 %v630, %v628
    %v632 = vxor.u32 %v631, 2147483648
    %v633 = vsel %vm550, %v632, %v631
    %v634 = vsub.s32 4, %v610
    %v635 = vsel %vm550, %v634, %v610
    %v636 = vsel %vm549, %v439, %v633
    %v637 = vsel %vm549, 0, %v635
    %v638 = vcosq.f32.pop %v636
    %v639 = vsinq.f32.pop %v636
    %vm640 = vweird.f32 %v439
    %v641 = vand.u32 %v637, 3
    %vm642 = vcmp.lt.s32.totalorder %v641, 2
    %vm643 = vcmp.eq.s32.totalorder %v641, 0
    %v644 = vxor.u32 %v639, 2147483648
    %v645 = vsel %vm643, %v638, %v644
    %vm646 = vcmp.eq.s32.totalorder %v641, 2
    %v647 = vxor.u32 %v638, 2147483648
    %v648 = vsel %vm646, %v647, %v639
    %v649 = vsel %vm642, %v645, %v648
    %v650 = vsel %vm640, nan, %v649
    %v653 = vrot.slane %v547, 1
    %v654 = vrot.slane %v650, 1
    %v657 = vmul.f32 %v442, %v653
    %v658 = vmul.f32 %v444, %v654
    %v659 = vand.u32 2147483647, %v437
    %vm660 = vcmp.le.f32.partialorder %v659, 0.7853982
    %vm661 = vcmp.lt.s32.totalorder %v437, 0
    %v662 = vand.u32 %v437, 2139095040
    %v663 = vshrl.u32 %v662, 23
    %v664 = vsub.s32 %v663, 127
    %v665 = vand.u32 2147483647, %v437
    %v666 = vand.u32 %v665, 8388607
    %v667 = vor.u32 %v666, 8388608
    %v668 = vsub.s32 0, %v667
    %v669 = vadd.s32 %v664, 1
    %vm670 = vcmp.gt.s32.totalorder %v669, 0
    %v671 = vsel %vm670, %v669, 0
    %v672 = vshrl.u32 %v671, 5
    %v673 = vand.u32 %v671, 31
    %v674 = vsub.s32 32, %v673
    %v675 = vshrl.u32 683565275, %v674
    %v676 = vshll.u32 683565275, %v673
    %v677 = vshrl.u32 2475754826, %v674
    %v678 = vor.u32 %v676, %v677
    %v679 = vshll.u32 2475754826, %v673
    %v680 = vshrl.u32 2131351028, %v674
    %v681 = vor.u32 %v679, %v680
    %v682 = vshll.u32 2131351028, %v673
    %v683 = vshrl.u32 2102212464, %v674
    %v684 = vor.u32 %v682, %v683
    %v685 = vshll.u32 2102212464, %v673
    %v686 = vshrl.u32 920167782, %v674
    %v687 = vor.u32 %v685, %v686
    %v688 = vshll.u32 920167782, %v673
    %v689 = vshrl.u32 1326507024, %v674
    %v690 = vor.u32 %v688, %v689
    %vm691 = vcmp.lt.s32.totalorder %v672, 1
    %vm692 = vcmp.lt.s32.totalorder %v672, 2
    %vm693 = vcmp.lt.s32.totalorder %v672, 3
    %vm694 = vcmp.lt.s32.totalorder %v672, 4
    %v695 = vsel %vm691, %v675, %v678
    %v696 = vsel %vm694, %v684, 2102212464
    %v697 = vsel %vm693, %v681, %v696
    %v698 = vsel %vm692, %v695, %v697
    %v699 = vsel %vm691, %v678, %v681
    %v700 = vsel %vm694, %v687, 920167782
    %v701 = vsel %vm693, %v684, %v700
    %v702 = vsel %vm692, %v699, %v701
    %v703 = vsel %vm691, %v681, %v684
    %v704 = vsel %vm694, %v690, 1326507024
    %v705 = vsel %vm693, %v687, %v704
    %v706 = vsel %vm692, %v703, %v705
    %v707 = vshll.u32 %v667, 8
    %v708 = vmul.u32.u64.compose %v707, %v706
    %v709 = vextract.low.u32 %v708
    %v710 = vextract.high.u32 %v708
    %v711 = vmul.u32.u64.compose %v707, %v702
    %v712 = vextract.low.u32 %v711
    %v713 = vextract.high.u32 %v711
    %v714 = vmul.u32 %v707, %v698
    %v715 = vadd.s32 %v710, %v712
    %vm716 = vc.u32 %v710, %v712
    %v717 = vadd.s32 %v713, 1
    %v718 = vsel %vm716, %v717, %v713
    %v719 = vadd.s32 %v714, %v718
    %v720 = vadd.s32 %v719, 536870912
    %v721 = vshrl.u32 %v720, 30
    %v722 = vshll.u32 %v721, 30
    %v723 = vsub.s32 %v719, %v722
    %vm724 = vcmp.lt.s32.totalorder %v723, 0
    %v725 = vsub.s32 0, %v723
    %v726 = vsel %vm724, %v725, %v723
    %v727 = vclz %v726
    %v728 = vsub.s32 %v727, 2
    %vm729 = vcmp.gt.s32.totalorder 0, %v728
    %v730 = vsel %vm729, 0, %v728
    %v731 = vsub.s32 32, %v730
    %v732 = vshll.u32 %v723, %v730
    %v733 = vshrl.u32 %v715, %v731
    %v734 = vor.u32 %v732, %v733
    %v735 = vsub.s32 4294967266, %v730
    %v736 = vadd.s32 %v735, 127
    %v737 = vshll.u32 %v736, 23
    %v738 = vor.u32 4788187, %v737
    %v739 = vand.u32 2147483647, %v738
    %v741 = vcvt.s32.f32 %v734
    %v742 = vmul.f32 %v741, %v739
    %v743 = vxor.u32 %v742, 2147483648
    %v744 = vsel %vm661, %v743, %v742
    %v745 = vsub.s32 4, %v721
    %v746 = vsel %vm661, %v745, %v721
    %v747 = vsel %vm660, %v437, %v744
    %v748 = vsel %vm660, 0, %v746
    %v749 = vcosq.f32.pop %v747
    %v750 = vsinq.f32.pop %v747
    %vm751 = vweird.f32 %v437
    %v752 = vadd.s32 %v748, 3
    %v753 = vand.u32 %v752, 3
    %vm754 = vcmp.lt.s32.totalorder %v753, 2
    %vm755 = vcmp.eq.s32.totalorder %v753, 0
    %v756 = vxor.u32 %v750, 2147483648
    %v757 = vsel %vm755, %v749, %v756
    %vm758 = vcmp.eq.s32.totalorder %v753, 2
    %v759 = vxor.u32 %v749, 2147483648
    %v760 = vsel %vm758, %v759, %v750
    %v761 = vsel %vm754, %v757, %v760
    %v762 = vsel %vm751, nan, %v761
    %v763 = vand.u32 2147483647, %v439
    %vm764 = vcmp.le.f32.partialorder %v763, 0.7853982
    %vm765 = vcmp.lt.s32.totalorder %v439, 0
    %v766 = vand.u32 %v439, 2139095040
    %v767 = vshrl.u32 %v766, 23
    %v768 = vsub.s32 %v767, 127
    %v769 = vand.u32 2147483647, %v439
    %v770 = vand.u32 %v769, 8388607
    %v771 = vor.u32 %v770, 8388608
    %v772 = vsub.s32 0, %v771
    %v773 = vadd.s32 %v768, 1
    %vm774 = vcmp.gt.s32.totalorder %v773, 0
    %v775 = vsel %vm774, %v773, 0
    %v776 = vshrl.u32 %v775, 5
    %v777 = vand.u32 %v775, 31
    %v778 = vsub.s32 32, %v777
    %v779 = vshrl.u32 683565275, %v778
    %v780 = vshll.u32 683565275, %v777
    %v781 = vshrl.u32 2475754826, %v778
    %v782 = vor.u32 %v780, %v781
    %v783 = vshll.u32 2475754826, %v777
    %v784 = vshrl.u32 2131351028, %v778
    %v785 = vor.u32 %v783, %v784
    %v786 = vshll.u32 2131351028, %v777
    %v787 = vshrl.u32 2102212464, %v778
    %v788 = vor.u32 %v786, %v787
    %v789 = vshll.u32 2102212464, %v777
    %v790 = vshrl.u32 920167782, %v778
    %v791 = vor.u32 %v789, %v790
    %v792 = vshll.u32 920167782, %v777
    %v793 = vshrl.u32 1326507024, %v778
    %v794 = vor.u32 %v792, %v793
    %vm795 = vcmp.lt.s32.totalorder %v776, 1
    %vm796 = vcmp.lt.s32.totalorder %v776, 2
    %vm797 = vcmp.lt.s32.totalorder %v776, 3
    %vm798 = vcmp.lt.s32.totalorder %v776, 4
    %v799 = vsel %vm795, %v779, %v782
    %v800 = vsel %vm798, %v788, 2102212464
    %v801 = vsel %vm797, %v785, %v800
    %v802 = vsel %vm796, %v799, %v801
    %v803 = vsel %vm795, %v782, %v785
    %v804 = vsel %vm798, %v791, 920167782
    %v805 = vsel %vm797, %v788, %v804
    %v806 = vsel %vm796, %v803, %v805
    %v807 = vsel %vm795, %v785, %v788
    %v808 = vsel %vm798, %v794, 1326507024
    %v809 = vsel %vm797, %v791, %v808
    %v810 = vsel %vm796, %v807, %v809
    %v811 = vshll.u32 %v771, 8
    %v812 = vmul.u32.u64.compose %v811, %v810
    %v813 = vextract.low.u32 %v812
    %v814 = vextract.high.u32 %v812
    %v815 = vmul.u32.u64.compose %v811, %v806
    %v816 = vextract.low.u32 %v815
    %v817 = vextract.high.u32 %v815
    %v818 = vmul.u32 %v811, %v802
    %v819 = vadd.s32 %v814, %v816
    %vm820 = vc.u32 %v814, %v816
    %v821 = vadd.s32 %v817, 1
    %v822 = vsel %vm820, %v821, %v817
    %v823 = vadd.s32 %v818, %v822
    %v824 = vadd.s32 %v823, 536870912
    %v825 = vshrl.u32 %v824, 30
    %v826 = vshll.u32 %v825, 30
    %v827 = vsub.s32 %v823, %v826
    %vm828 = vcmp.lt.s32.totalorder %v827, 0
    %v829 = vsub.s32 0, %v827
    %v830 = vsel %vm828, %v829, %v827
    %v831 = vclz %v830
    %v832 = vsub.s32 %v831, 2
    %vm833 = vcmp.gt.s32.totalorder 0, %v832
    %v834 = vsel %vm833, 0, %v832
    %v835 = vsub.s32 32, %v834
    %v836 = vshll.u32 %v827, %v834
    %v837 = vshrl.u32 %v819, %v835
    %v838 = vor.u32 %v836, %v837
    %v839 = vsub.s32 4294967266, %v834
    %v840 = vadd.s32 %v839, 127
    %v841 = vshll.u32 %v840, 23
    %v842 = vor.u32 4788187, %v841
    %v843 = vand.u32 2147483647, %v842
    %v845 = vcvt.s32.f32 %v838
    %v846 = vmul.f32 %v845, %v843
    %v847 = vxor.u32 %v846, 2147483648
    %v848 = vsel %vm765, %v847, %v846
    %v849 = vsub.s32 4, %v825
    %v850 = vsel %vm765, %v849, %v825
    %v851 = vsel %vm764, %v439, %v848
    %v852 = vsel %vm764, 0, %v850
    %v853 = vcosq.f32.pop %v851
    %v854 = vsinq.f32.pop %v851
    %vm855 = vweird.f32 %v439
    %v856 = vadd.s32 %v852, 3
    %v857 = vand.u32 %v856, 3
    %vm858 = vcmp.lt.s32.totalorder %v857, 2
    %vm859 = vcmp.eq.s32.totalorder %v857, 0
    %v860 = vxor.u32 %v854, 2147483648
    %v861 = vsel %vm859, %v853, %v860
    %vm862 = vcmp.eq.s32.totalorder %v857, 2
    %v863 = vxor.u32 %v853, 2147483648
    %v864 = vsel %vm862, %v863, %v854
    %v865 = vsel %vm858, %v861, %v864
    %v866 = vsel %vm855, nan, %v865
    %v869 = vrot.slane %v762, 1
    %v870 = vrot.slane %v866, 1
    %v873 = vmul.f32 %v442, %v869
    %v874 = vmul.f32 %v444, %v870
    %v877 = vrot.slane %v873, 7
    %v878 = vrot.slane %v874, 7
    %vm881 = vcmask 1040384
    %v882 = vsel %vm881, %v657, %v877
    %v883 = vsel %vm881, %v658, %v878
    %v886 = vcombine.low %v882, %v883
    %v888 = vunpack.c.l.s4 1983009808
    %v889 = vunpack.c.0.s8 %v888
    %v890 = vlaneseq
    %v891 = vshrl.u32 %v890, 7
    %v892 = vsub.s32 %v889, %v891
    %v893 = vrot.slane %v886, %v892
    %895 = vst [vmem:[#allocation2] sm:$0xf] %v893
    // Predicated region
    $region22: #{tpu_custom_call.1} parent=1 // pred_check
      _
    $region23: #{tpu_custom_call.1} parent=1 // pred_check_branch
      %897 = sbr.rel (0) target = $region25
    $region24: #{tpu_custom_call.1} parent=1 // pred_region
      %s899 = ssub.s32 64, 64
      %900 = vsyncadd [#allocation3], %s899
      %s902 = sshll.u32 [#allocation2], 4
      %s903 = int_to_ptr.vmem [resolvable:$true] %s902
      %905 = dma.vmem_to_hbm [thread:$0]  %s903, 64, %s5, [#allocation3]
    $region25: #{tpu_custom_call.1} parent=1 // pred_fallthru
      _
    // Predicated region
    $region26: #{tpu_custom_call.1} parent=1 // pred_check
      _
    $region27: #{tpu_custom_call.1} parent=1 // pred_check_branch
      %907 = sbr.rel (0) target = $region29
    $region28: #{tpu_custom_call.1} parent=1 // pred_region
      %908 = dma.done [#allocation3], 64
    $region29: #{tpu_custom_call.1} parent=1 // pred_fallthru
      _
    %909 = vsyncpa [#allocation3], 1

</llo_original>
